<compile_context>
chip_gen: v7x
topology: tpu7x:2x2x1
jax: 0.10.0
libtpu: 0.0.40
codegen_flags: <defaults>
</compile_context>

<pallas_src>
import jax
import jax.numpy as jnp
from jax.experimental import pallas as pl
from jax.experimental.pallas import tpu as pltpu


_TARGET_TILE_BYTES = 2 * 1024 * 1024      # per-buffer tile budget (~x4 with in+out double-buffered)
_VMEM_LIMIT_BYTES = 32 * 1024 * 1024      # safe on v5e / v6e / v7x


def _add_bias_kernel(x_ref, b_ref, o_ref):
    # Single elementwise add; b_ref is either (TILE_R, 1) (lane broadcast, 4-D
    # path) or (1, TILE_C) (sublane broadcast, 2-D path).  Bias was cast to the
    # output dtype once in the wrapper, so the body is just add + (no-op) cast.
    o_ref[...] = (x_ref[...] + b_ref[...]).astype(o_ref.dtype)


def _sublane_multiple(*dtypes):
    min_itemsize = min(jnp.dtype(d).itemsize for d in dtypes)
    return 8 * max(1, 4 // min_itemsize)       # 8 for f32, 16 for bf16, 32 for int8


def _pick_tiles(rows, cols, itemsize, sub_mult):
    """(tile_r, tile_c) for a (rows, cols) array: lane tiles 128-aligned (or the
    full extent), row tiles sublane-aligned, sized to ~_TARGET_TILE_BYTES."""
    if cols % 128 == 0:
        max_lane = max(128, (_TARGET_TILE_BYTES // max(sub_mult * itemsize, 1)) // 128 * 128)
        tile_c = min(cols, max_lane)
    else:
        tile_c = cols                           # full extent is always a legal block dim
    row_bytes = max(tile_c * itemsize, 1)
    if rows <= sub_mult:
        tile_r = rows                           # full extent
    else:
        tile_r = max(sub_mult, (_TARGET_TILE_BYTES // row_bytes) // sub_mult * sub_mult)
        tile_r = min(tile_r, (rows // sub_mult) * sub_mult)
    return tile_r, tile_c


def _compiler_params():
    return pltpu.CompilerParams(
        dimension_semantics=("parallel", "parallel"),
        vmem_limit_bytes=_VMEM_LIMIT_BYTES,
    )


def _add_bias_per_row(x2d, bias_col, out_dtype):
    """x2d: (R, L); bias_col: (R, 1), broadcast along the lane axis."""
    rows, cols = x2d.shape
    sub_mult = _sublane_multiple(x2d.dtype, out_dtype)
    tile_r, tile_c = _pick_tiles(rows, cols, jnp.dtype(out_dtype).itemsize, sub_mult)
    grid = (pl.cdiv(rows, tile_r), pl.cdiv(cols, tile_c))
    return pl.pallas_call(
        _add_bias_kernel,
        out_shape=jax.ShapeDtypeStruct((rows, cols), out_dtype),
        grid=grid,
        in_specs=[
            pl.BlockSpec((tile_r, tile_c), lambda i, j: (i, j)),
            pl.BlockSpec((tile_r, 1), lambda i, j: (i, 0)),
        ],
        out_specs=pl.BlockSpec((tile_r, tile_c), lambda i, j: (i, j)),
        compiler_params=_compiler_params(),
    )(x2d, bias_col)


def _add_bias_per_col(x2d, bias_row, out_dtype):
    """x2d: (R, L); bias_row: (1, L), broadcast along the sublane axis."""
    rows, cols = x2d.shape
    sub_mult = _sublane_multiple(x2d.dtype, out_dtype)
    tile_r, tile_c = _pick_tiles(rows, cols, jnp.dtype(out_dtype).itemsize, sub_mult)
    grid = (pl.cdiv(rows, tile_r), pl.cdiv(cols, tile_c))
    return pl.pallas_call(
        _add_bias_kernel,
        out_shape=jax.ShapeDtypeStruct((rows, cols), out_dtype),
        grid=grid,
        in_specs=[
            pl.BlockSpec((tile_r, tile_c), lambda i, j: (i, j)),
            pl.BlockSpec((1, tile_c), lambda i, j: (0, j)),   # constant over row tiles -> VMEM-resident
        ],
        out_specs=pl.BlockSpec((tile_r, tile_c), lambda i, j: (i, j)),
        compiler_params=_compiler_params(),
    )(x2d, bias_row)


class AddBias:
    """JAX/Pallas port of the PyTorch AddBias module."""

    def __init__(self, bias):
        bias = jnp.asarray(bias)
        assert bias.ndim == 1
        self._bias = bias.reshape(-1, 1)          # matches nn.Parameter(bias.unsqueeze(1))

    def __call__(self, x):
        c = self._bias.shape[0]
        # PyTorch's `x + bias` promotes dtypes; match that instead of forcing x.dtype.
        out_dtype = jnp.result_type(x.dtype, self._bias.dtype)
        bias_1d = self._bias.reshape(-1).astype(out_dtype)    # cast hoisted out of the kernel

        if x.ndim == 2:
            n, cx = x.shape
            assert cx == c
            if (128 % c == 0) and ((n * c) % 128 == 0):
                # Lane-dense path: view as (N*C/128, 128); column j maps to channel j % C.
                rows = (n * c) // 128
                x_flat = x.reshape(rows, 128)
                bias_row = jnp.tile(bias_1d, 128 // c).reshape(1, 128)
                out = _add_bias_per_col(x_flat, bias_row, out_dtype)
                return out.reshape(n, c)
            # Generic fallback: tile the batch dim, bias broadcast along sublanes.
            bias_row = bias_1d.reshape(1, c)
            return _add_bias_per_col(x, bias_row, out_dtype)

        if x.ndim == 4:
            n, cx, h, w = x.shape
            assert cx == c
            rows, hw = n * c, h * w
            x_flat = x.reshape(rows, hw)                      # row r -> (batch r // C, channel r % C)
            bias_col = jnp.tile(bias_1d, n).reshape(rows, 1)  # tiny (N*C, 1), built once per call
            out = _add_bias_per_row(x_flat, bias_col, out_dtype)
            return out.reshape(n, c, h, w)

        raise ValueError("AddBias expects 2-D or 4-D input")


if __name__ == "__main__":
    key = jax.random.PRNGKey(0)
    k_bias, k_x4, k_x2a, k_x2b = jax.random.split(key, 4)

    C = 4
    bias = jax.random.normal(k_bias, (C,), dtype=jnp.float32)
    module = AddBias(bias)

    # 4-D path (NCHW): batch=2, channels=4, spatial 16x16.
    x4 = jax.random.normal(k_x4, (2, C, 16, 16), dtype=jnp.float32)
    y4 = module(x4)
    jax.block_until_ready(y4)
    ref4 = x4 + bias.reshape(1, C, 1, 1)
    assert y4.shape == ref4.shape and y4.dtype == ref4.dtype
    assert jnp.allclose(y4, ref4, atol=1e-6), "4D mismatch"

    # 2-D path, generic tiling (N*C not a multiple of 128): batch=8, features=4.
    x2a = jax.random.normal(k_x2a, (8, C), dtype=jnp.float32)
    y2a = module(x2a)
    jax.block_until_ready(y2a)
    assert jnp.allclose(y2a, x2a + bias.reshape(1, C), atol=1e-6), "2D generic mismatch"

    # 2-D path, lane-dense tiling (N*C multiple of 128): batch=64, features=4.
    x2b = jax.random.normal(k_x2b, (64, C), dtype=jnp.float32)
    y2b = module(x2b)
    jax.block_until_ready(y2b)
    assert jnp.allclose(y2b, x2b + bias.reshape(1, C), atol=1e-6), "2D lane-dense mismatch"

    print("KERNEL_OK")
</pallas_src>

<mosaic_0001>
module attributes {stable_mosaic.version = 11 : i64} {
  func.func @_add_bias_kernel(%arg0: i32, %arg1: i32, %arg2: memref<8x256xf32, #tpu.memory_space<vmem>>, %arg3: memref<8x1xf32, #tpu.memory_space<vmem>>, %arg4: memref<8x256xf32, #tpu.memory_space<vmem>>) attributes {dimension_semantics = [#tpu.dimension_semantics<parallel>, #tpu.dimension_semantics<parallel>], iteration_bounds = array<i64: 1, 1>, scalar_prefetch = 0 : i64, scratch_operands = 0 : i64, tpu.core_type = #tpu.core_type<tc>, window_params = [{transform_indices = @transform_0, window_bounds = array<i64: 8, 256>}, {transform_indices = @transform_1, window_bounds = array<i64: 8, 1>}, {transform_indices = @transform_2, window_bounds = array<i64: 8, 256>}]} {
    %c0 = arith.constant 0 : index
    %c0_0 = arith.constant 0 : index
    %0 = vector.load %arg2[%c0, %c0_0] : memref<8x256xf32, #tpu.memory_space<vmem>>, vector<8x256xf32>
    %c0_1 = arith.constant 0 : index
    %c0_2 = arith.constant 0 : index
    %1 = vector.load %arg3[%c0_1, %c0_2] : memref<8x1xf32, #tpu.memory_space<vmem>>, vector<8x1xf32>
    %2 = vector.broadcast %1 : vector<8x1xf32> to vector<8x256xf32>
    %3 = arith.addf %0, %2 : vector<8x256xf32>
    %c0_3 = arith.constant 0 : index
    %c0_4 = arith.constant 0 : index
    %4 = vector.load %arg4[%c0_3, %c0_4] : memref<8x256xf32, #tpu.memory_space<vmem>>, vector<8x256xf32>
    tpu.vector_store %arg4[%c0_3, %c0_4], %3 {strides = array<i32>} : memref<8x256xf32, #tpu.memory_space<vmem>>, vector<8x256xf32>,
    return
  }
  func.func @transform_0(%arg0: i32, %arg1: i32) -> (i32, i32) {
    %c0_i32 = arith.constant 0 : i32
    return %arg0, %arg1 : i32, i32
  }
  func.func @transform_1(%arg0: i32, %arg1: i32) -> (i32, i32) {
    %c0_i32 = arith.constant 0 : i32
    %c0_i32_0 = arith.constant 0 : i32
    return %arg0, %c0_i32 : i32, i32
  }
  func.func @transform_2(%arg0: i32, %arg1: i32) -> (i32, i32) {
    %c0_i32 = arith.constant 0 : i32
    return %arg0, %arg1 : i32, i32
  }
}

</mosaic_0001>

<llo_original>
// kernel: tpu_custom_call.1
$region0: #{tpu_custom_call.1}
  #allocation0 [shape = 'u32[]', space=smem, size = 0x4, offset = 0x4, fixed_abs, tag = 'smem constant byte address 0x4 - core index']
  #allocation1 [shape = 'u32[144,128]{1,0:T(1,128)}', space=vmem, size = 0x12000, scoped, tag = 'internal scratch']
  %s0 = inlined_call_operand.hbm [shape: f32[8,256], index: 0, kind: input, shape index: {}]
  %s1 = inlined_call_operand.vmem [shape: f32[8,1], index: 1, kind: input, shape index: {}]
  %s2 = inlined_call_operand.hbm [shape: f32[8,256], index: 2, kind: output, shape index: {}]
  %s3 = sld [smem:[#allocation0]]
  $region22: #{tpu_custom_call.1} parent=0
    _
  %s5 = ssub.s32 1, %s3
  %s6 = scalar_select 0, %s5, %s3
  $region1: #{tpu_custom_call.1} parent=0
    #allocation2 [shape = 'u8[8192]{0}', space=vmem, size = 0x2000, scoped, tag = 'input window, operand 0, single buffered']
    #allocation3 [shape = 's32[1]{0}', space=sflag, size = 0x4, scoped, tag = 'scoped memory for tpu_custom_call.1']
    #allocation4 [shape = 's32[1]{0}', space=sflag, size = 0x4, scoped, tag = 'scoped memory for tpu_custom_call.1']
    #allocation5 [shape = 'u8[8192]{0}', space=vmem, size = 0x2000, scoped, tag = 'output window, operand 0, single buffered']
    %7 = vsyncpa [#allocation3], 0
    %8 = vsyncpa [#allocation4], 0
    // Predicated region
    $region2: #{tpu_custom_call.1} parent=1 // pred_check
      _
    $region3: #{tpu_custom_call.1} parent=1 // pred_check_branch
      %10 = sbr.rel (0) target = $region5
    $region4: #{tpu_custom_call.1} parent=1 // pred_region
      %s12 = ssub.s32 256, 256
      %13 = vsyncadd [#allocation3], %s12
      %s15 = sshll.u32 [#allocation2], 4
      %s16 = int_to_ptr.vmem [resolvable:$true] %s15
      %18 = dma.hbm_to_vmem [thread:$0]  %s0, 256, %s16, [#allocation3]
    $region5: #{tpu_custom_call.1} parent=1 // pred_fallthru
      _
    // Predicated region
    $region6: #{tpu_custom_call.1} parent=1 // pred_check
      _
    $region7: #{tpu_custom_call.1} parent=1 // pred_check_branch
      %20 = sbr.rel (0) target = $region9
    $region8: #{tpu_custom_call.1} parent=1 // pred_region
      _
    $region9: #{tpu_custom_call.1} parent=1 // pred_fallthru
      _
    // Predicated region
    $region10: #{tpu_custom_call.1} parent=1 // pred_check
      _
    $region11: #{tpu_custom_call.1} parent=1 // pred_check_branch
      %22 = sbr.rel (0) target = $region13
    $region12: #{tpu_custom_call.1} parent=1 // pred_region
      %23 = dma.done [#allocation3], 256
    $region13: #{tpu_custom_call.1} parent=1 // pred_fallthru
      _
    %v24 = vld [vmem:[#allocation2] sm:$0xff]
    %v25 = vld [vmem:[#allocation2 + $0x8] sm:$0xff]
    %v26 = vld [vmem:[%s1] sm:$0xff]
    %28 = vset.pattern.permute.xlu0 0
    %29 = vperm.xlu0 %28, %v26
    %v30 = vpop.permute.xlu0 %29
    %v32 = vadd.f32 %v24, %v30
    %v33 = vadd.f32 %v25, %v30
    %34 = vst [vmem:[#allocation5] sm:$0xff] %v32
    %35 = vst [vmem:[#allocation5 + $0x8] sm:$0xff] %v33
    // Predicated region
    $region14: #{tpu_custom_call.1} parent=1 // pred_check
      _
    $region15: #{tpu_custom_call.1} parent=1 // pred_check_branch
      %37 = sbr.rel (0) target = $region17
    $region16: #{tpu_custom_call.1} parent=1 // pred_region
      %s39 = ssub.s32 256, 256
      %40 = vsyncadd [#allocation4], %s39
      %s42 = sshll.u32 [#allocation5], 4
      %s43 = int_to_ptr.vmem [resolvable:$true] %s42
      %45 = dma.vmem_to_hbm [thread:$0]  %s43, 256, %s2, [#allocation4]
    $region17: #{tpu_custom_call.1} parent=1 // pred_fallthru
      _
    // Predicated region
    $region18: #{tpu_custom_call.1} parent=1 // pred_check
      _
    $region19: #{tpu_custom_call.1} parent=1 // pred_check_branch
      %47 = sbr.rel (0) target = $region21
    $region20: #{tpu_custom_call.1} parent=1 // pred_region
      %48 = dma.done [#allocation4], 256
    $region21: #{tpu_custom_call.1} parent=1 // pred_fallthru
      _
    %49 = vsyncpa [#allocation3], 1
    %50 = vsyncpa [#allocation4], 1

</llo_original>
